<compile_context>
chip_gen: v5e
topology: v5e:2x2
jax: 0.10.0
libtpu: 0.0.40
codegen_flags: <defaults>
</compile_context>

<pallas_src>
import functools

import jax
import jax.numpy as jnp
from jax.experimental import pallas as pl
from jax.experimental.pallas import tpu as pltpu


_LANE = 128
# Conservative working-set target: fits default/raised scoped VMEM on
# v5e (16 MiB default), v6e (32 MiB) and v7x (64 MiB physical).
_VMEM_BUDGET = 24 * 1024 * 1024


def _round_up(a, b):
    return (a + b - 1) // b * b


def _vmem_limit(ws_bytes):
    # Explicit scoped-VMEM request with headroom; in-budget plans stay well
    # below v7x's 64 MiB physical VMEM.
    return int(min(max(ws_bytes * 5 // 4, 16 << 20), 48 << 20))


# ---------------------------------------------------------------------------
# Linear layer:  h = x @ W + b   (x pre-flattened to (B*N_pad, F_in_pad))
# ---------------------------------------------------------------------------
def _linear_kernel(x_ref, w_ref, b_ref, o_ref, acc_ref, *, tk, w_resident,
                   scale_relu):
    k = pl.program_id(1)

    @pl.when(k == 0)
    def _():
        acc_ref[...] = jnp.zeros_like(acc_ref)

    if w_resident:
        # Weight is fully resident in VMEM; slice the contraction panel.
        wk = w_ref[pl.ds(pl.multiple_of(k * tk, tk), tk), :]
    else:
        wk = w_ref[...]
    acc_ref[...] += jnp.dot(x_ref[...], wk, preferred_element_type=jnp.float32)

    @pl.when(k == pl.num_programs(1) - 1)
    def _():
        h = acc_ref[...] + b_ref[...]
        if scale_relu:
            # Identity-adjacency fast path: out = relu(h / (1 + 1e-6)).
            h = jnp.maximum(h * (1.0 / (1.0 + 1e-6)), 0.0)
        o_ref[...] = h.astype(o_ref.dtype)


def _plan_linear(R, K, Fw, x_bytes, out_bytes):
    for w_res in (True, False):
        for tr in (512, 256, 128):
            if R % tr:
                continue
            for tk in (1024, 512, 256, 128):
                if K % tk:
                    continue
                w_ws = 2 * K * Fw * 4 if w_res else 2 * tk * Fw * 4
                ws = (2 * tr * tk * x_bytes + w_ws + 2 * tr * Fw * out_bytes
                      + tr * Fw * 4 + 2 * Fw * 4)
                if ws <= _VMEM_BUDGET:
                    return tr, tk, w_res, ws
    # TODO(synk): add an F_out tile axis for very wide layers.
    ws = (2 * 128 * 128 * x_bytes + 2 * 128 * Fw * 4 + 2 * 128 * Fw * out_bytes
          + 128 * Fw * 4 + 2 * Fw * 4)
    return 128, 128, False, ws


def _linear(x2d, w_t, b2d, *, out_dtype, scale_relu):
    R, K = x2d.shape
    Fw = w_t.shape[1]
    tr, tk, w_res, ws = _plan_linear(R, K, Fw, x2d.dtype.itemsize,
                                     jnp.dtype(out_dtype).itemsize)
    grid = (R // tr, K // tk)

    if w_res:
        w_spec = pl.BlockSpec((K, Fw), lambda i, k: (0, 0))     # resident
    else:
        w_spec = pl.BlockSpec((tk, Fw), lambda i, k: (k, 0))    # streamed

    return pl.pallas_call(
        functools.partial(_linear_kernel, tk=tk, w_resident=w_res,
                          scale_relu=scale_relu),
        out_shape=jax.ShapeDtypeStruct((R, Fw), out_dtype),
        grid_spec=pltpu.PrefetchScalarGridSpec(
            num_scalar_prefetch=0,
            grid=grid,
            in_specs=[
                pl.BlockSpec((tr, tk), lambda i, k: (i, k)),
                w_spec,
                pl.BlockSpec((1, Fw), lambda i, k: (0, 0)),
            ],
            out_specs=pl.BlockSpec((tr, Fw), lambda i, k: (i, 0)),
            scratch_shapes=[pltpu.VMEM((tr, Fw), jnp.float32)],
        ),
        compiler_params=pltpu.CompilerParams(
            dimension_semantics=("parallel", "arbitrary"),
            vmem_limit_bytes=_vmem_limit(ws)),
    )(x2d, w_t, b2d)


# ---------------------------------------------------------------------------
# Graph aggregation:  out = relu( (adj @ h) / (deg + 1e-6) )
#   deg comes for free from the matmul via the "ones" column of h (deg_col).
# ---------------------------------------------------------------------------
def _agg_kernel(adj_ref, h_ref, o_ref, acc_ref, *, tk, deg_col, out_w,
                h_resident):
    k = pl.program_id(1)

    @pl.when(k == 0)
    def _():
        acc_ref[...] = jnp.zeros_like(acc_ref)

    if h_resident:
        # h for the whole batch element is resident; slice the k panel.
        hk = h_ref[pl.ds(pl.multiple_of(k * tk, tk), tk), :]
    else:
        hk = h_ref[...]
    # No dtype conversion: bf16 adj x bf16 h (or f32 x f32) straight to the
    # MXU, accumulation in f32.
    acc_ref[...] += jnp.dot(adj_ref[...], hk, preferred_element_type=jnp.float32)

    @pl.when(k == pl.num_programs(1) - 1)
    def _():
        acc = acc_ref[...]
        deg = acc[:, deg_col:deg_col + 1]                 # row degree lane
        inv = pl.reciprocal(deg + 1e-6, approx=False)     # exact (1e-4 tol)
        o_ref[...] = jnp.maximum(acc[:, :out_w] * inv, 0.0).astype(o_ref.dtype)


def _plan_agg(N_p, F_aug, out_w, adj_bytes, h_bytes, out_bytes):
    for h_res in (True, False):
        for tm in (512, 256, 128):
            if N_p % tm:
                continue
            for tk in (1024, 512, 256, 128):
                if N_p % tk:
                    continue
                h_ws = (2 * N_p * F_aug * h_bytes if h_res
                        else 2 * tk * F_aug * h_bytes)
                ws = (2 * tm * tk * adj_bytes + h_ws
                      + 2 * tm * out_w * out_bytes + tm * F_aug * 4)
                if ws <= _VMEM_BUDGET:
                    return tm, tk, h_res, ws
    # TODO(synk): add an F tile axis here (needed on v5e / very wide F_out).
    ws = (2 * 128 * 128 * adj_bytes + 2 * 128 * F_aug * h_bytes
          + 2 * 128 * out_w * out_bytes + 128 * F_aug * 4)
    return 128, 128, False, ws


def _aggregate(adj_p, h, *, out_w, deg_col, out_dtype):
    B, N_p, _ = adj_p.shape
    F_aug = h.shape[-1]
    tm, tk, h_res, ws = _plan_agg(N_p, F_aug, out_w,
                                  adj_p.dtype.itemsize, h.dtype.itemsize,
                                  jnp.dtype(out_dtype).itemsize)
    nI = N_p // tm
    nK = N_p // tk
    # (B, row-tile) folded into one parallel axis (even 2-TC split on v7x);
    # k reduction stays last / arbitrary.
    grid = (B * nI, nK)

    if h_res:
        h_spec = pl.BlockSpec((pl.Squeezed(), N_p, F_aug),
                              lambda p, k: (p // nI, 0, 0))
    else:
        h_spec = pl.BlockSpec((pl.Squeezed(), tk, F_aug),
                              lambda p, k: (p // nI, k, 0))

    h_sweeps = 1 if h_res else nI
    cost = pl.CostEstimate(
        flops=int(2 * B * N_p * N_p * F_aug),
        transcendentals=0,
        bytes_accessed=int(adj_p.size * adj_p.dtype.itemsize
                           + h_sweeps * h.size * h.dtype.itemsize
                           + B * N_p * out_w * jnp.dtype(out_dtype).itemsize),
    )

    return pl.pallas_call(
        functools.partial(_agg_kernel, tk=tk, deg_col=deg_col, out_w=out_w,
                          h_resident=h_res),
        out_shape=jax.ShapeDtypeStruct((B, N_p, out_w), out_dtype),
        grid_spec=pltpu.PrefetchScalarGridSpec(
            num_scalar_prefetch=0,
            grid=grid,
            in_specs=[
                pl.BlockSpec((pl.Squeezed(), tm, tk),
                             lambda p, k: (p // nI, p % nI, k)),
                h_spec,
            ],
            out_specs=pl.BlockSpec((pl.Squeezed(), tm, out_w),
                                   lambda p, k: (p // nI, p % nI, 0)),
            scratch_shapes=[pltpu.VMEM((tm, F_aug), jnp.float32)],
        ),
        compiler_params=pltpu.CompilerParams(
            dimension_semantics=("parallel", "arbitrary"),
            vmem_limit_bytes=_vmem_limit(ws)),
        cost_estimate=cost,
    )(adj_p, h)


# ---------------------------------------------------------------------------
# Wrapper
# ---------------------------------------------------------------------------
def dynamic_gcn_conv(x, adj_matrix, weight, bias):
    """x: (B, N, F_in), adj_matrix: (B, M, M), weight: (F_out, F_in), bias: (F_out,).

    If `adj_matrix` is bfloat16 (cast once upstream; exact for 0/1 adjacencies)
    the aggregation runs a bf16 x bf16 MXU path with f32 accumulation and
    halved adjacency/h HBM traffic.  Otherwise everything stays f32 and the
    adjacency is read directly without any cast pre-pass.
    """
    B, N, F_in = x.shape
    F_out = weight.shape[0]
    out_dtype = x.dtype

    F_in_p = _round_up(F_in, _LANE)
    F_out_p = _round_up(F_out, _LANE)
    N_p = _round_up(N, _LANE)

    # Static shape check (mirrors the dynamic check in the PyTorch forward;
    # shapes are static under jit).
    identity_path = adj_matrix.shape[1] != N

    # Aggregation compute dtype follows the adjacency dtype (see docstring).
    agg_dtype = jnp.bfloat16 if adj_matrix.dtype == jnp.bfloat16 else jnp.float32

    # Degree column for h: placed in the zero padding of F_out when available,
    # otherwise one extra 128-lane block is appended (only when F_out % 128 == 0).
    if identity_path:
        F_aug, deg_col = F_out_p, None
    elif F_out_p > F_out:
        F_aug, deg_col = F_out_p, F_out
    else:
        F_aug, deg_col = F_out_p + _LANE, F_out_p

    # Zero-padded, pre-transposed parameters.  The degree column has zero
    # weights and bias 1.0, so the linear emits the "ones" column for free.
    w_t = jnp.pad(weight.T.astype(jnp.float32),
                  ((0, F_in_p - F_in), (0, F_aug - F_out)))
    b2d = jnp.pad(bias.astype(jnp.float32).reshape(1, F_out),
                  ((0, 0), (0, F_aug - F_out)))
    if not identity_path:
        b2d = b2d.at[0, deg_col].set(1.0)

    # Zero-padded node features, flattened to one big row-matrix for the MXU.
    if N_p == N and F_in_p == F_in:
        x_p = x
    else:
        x_p = jnp.pad(x, ((0, 0), (0, N_p - N), (0, F_in_p - F_in)))
    x2d = x_p.reshape(B * N_p, F_in_p)

    if identity_path:
        # Identity adjacency: adj @ h == h and deg == 1, so skip the dense
        # aggregation entirely and fuse the 1/(1+1e-6) scale + relu epilogue.
        h = _linear(x2d, w_t, b2d, out_dtype=out_dtype, scale_relu=True)
        return h.reshape(B, N_p, F_aug)[:, :N, :F_out]

    # h carries the aggregation compute dtype (bf16 or f32); the linear itself
    # accumulates in f32.
    h = _linear(x2d, w_t, b2d, out_dtype=agg_dtype, scale_relu=False)
    h = h.reshape(B, N_p, F_aug)

    # Avoid re-materializing the O(N^2) adjacency when it is already lane
    # aligned and in the compute dtype.
    if N_p == N and adj_matrix.dtype == agg_dtype:
        adj_p = adj_matrix
    else:
        adj_p = jnp.pad(adj_matrix.astype(agg_dtype),
                        ((0, 0), (0, N_p - N), (0, N_p - N)))

    out_p = _aggregate(adj_p, h, out_w=F_out_p, deg_col=deg_col,
                       out_dtype=out_dtype)
    return out_p[:, :N, :F_out]


# ---------------------------------------------------------------------------
# Pure-JAX reference (matches the PyTorch module)
# ---------------------------------------------------------------------------
def _reference(x, adj, weight, bias):
    B, N, _ = x.shape
    if adj.shape[1] != N:
        adj = jnp.broadcast_to(jnp.eye(N, dtype=x.dtype)[None], (B, N, N))
    adj = adj.astype(jnp.float32)
    h = jnp.einsum("bnf,of->bno", x, weight) + bias
    out = jnp.einsum("bnm,bmo->bno", adj, h)
    out = out / (jnp.sum(adj, axis=2, keepdims=True) + 1e-6)
    return jnp.maximum(out, 0.0)


if __name__ == "__main__":
    key = jax.random.PRNGKey(0)
    k_x, k_adj, k_w, k_b, k_x2, k_adj2 = jax.random.split(key, 6)

    # 1) Small shapes consistent with the module: batch=2, nodes=8, 32->32.
    B, N, F_in, F_out = 2, 8, 32, 32
    x = jax.random.normal(k_x, (B, N, F_in), dtype=jnp.float32)
    adj = (jax.random.uniform(k_adj, (B, N, N)) > 0.5).astype(jnp.float32)
    bound = 1.0 / jnp.sqrt(jnp.float32(F_in))
    weight = jax.random.uniform(k_w, (F_out, F_in), minval=-bound, maxval=bound,
                                dtype=jnp.float32)
    bias = jax.random.uniform(k_b, (F_out,), minval=-bound, maxval=bound,
                              dtype=jnp.float32)

    out = jax.block_until_ready(dynamic_gcn_conv(x, adj, weight, bias))
    ref = _reference(x, adj, weight, bias)
    assert out.shape == (B, N, F_out)
    assert jnp.allclose(out, ref, atol=1e-4, rtol=1e-4), \
        float(jnp.max(jnp.abs(out - ref)))

    # 2) Mismatched adjacency -> identity fast path (no dense aggregation).
    adj_bad = jnp.ones((B, N + 4, N + 4), dtype=jnp.float32)
    out2 = jax.block_until_ready(dynamic_gcn_conv(x, adj_bad, weight, bias))
    ref2 = _reference(x, adj_bad, weight, bias)
    assert jnp.allclose(out2, ref2, atol=1e-4, rtol=1e-4), \
        float(jnp.max(jnp.abs(out2 - ref2)))

    # 3) F_out an exact multiple of 128 -> exercises the extra degree-lane block.
    Fo3 = 128
    bound3 = 1.0 / jnp.sqrt(jnp.float32(F_in))
    w3 = jax.random.uniform(k_w, (Fo3, F_in), minval=-bound3, maxval=bound3,
                            dtype=jnp.float32)
    b3 = jax.random.uniform(k_b, (Fo3,), minval=-bound3, maxval=bound3,
                            dtype=jnp.float32)
    out3 = jax.block_until_ready(dynamic_gcn_conv(x, adj, w3, b3))
    ref3 = _reference(x, adj, w3, b3)
    assert out3.shape == (B, N, Fo3)
    assert jnp.allclose(out3, ref3, atol=1e-4, rtol=1e-4), \
        float(jnp.max(jnp.abs(out3 - ref3)))

    # 4) Larger, non-aligned shapes (f32 path): padding + multi-tile reduction
    #    + resident-h slicing across several k tiles.
    B2, N2, F_in2, F_out2 = 2, 300, 300, 72
    x2 = jax.random.normal(k_x2, (B2, N2, F_in2), dtype=jnp.float32)
    adj2 = (jax.random.uniform(k_adj2, (B2, N2, N2)) > 0.7).astype(jnp.float32)
    bound2 = 1.0 / jnp.sqrt(jnp.float32(F_in2))
    w2 = jax.random.uniform(k_w, (F_out2, F_in2), minval=-bound2, maxval=bound2,
                            dtype=jnp.float32)
    b2 = jax.random.uniform(k_b, (F_out2,), minval=-bound2, maxval=bound2,
                            dtype=jnp.float32)
    out4 = jax.block_until_ready(dynamic_gcn_conv(x2, adj2, w2, b2))
    ref4 = _reference(x2, adj2, w2, b2)
    assert out4.shape == (B2, N2, F_out2)
    assert jnp.allclose(out4, ref4, atol=1e-3, rtol=1e-3), \
        float(jnp.max(jnp.abs(out4 - ref4)))

    # 5) Caller-provided bf16 adjacency (exact for 0/1) -> bf16 MXU path with
    #    bf16 h; looser tolerance covers the bf16 rounding of h.
    out5 = jax.block_until_ready(
        dynamic_gcn_conv(x2, adj2.astype(jnp.bfloat16), w2, b2))
    assert out5.shape == (B2, N2, F_out2)
    assert jnp.allclose(out5, ref4, atol=5e-3, rtol=5e-3), \
        float(jnp.max(jnp.abs(out5 - ref4)))

    print("KERNEL_OK")
</pallas_src>

<mosaic_0001>
module attributes {stable_mosaic.version = 11 : i64} {
  func.func @_linear_kernel(%arg0: i32, %arg1: i32, %arg2: memref<256x128xf32, #tpu.memory_space<vmem>>, %arg3: memref<128x128xf32, #tpu.memory_space<vmem>>, %arg4: memref<1x128xf32, #tpu.memory_space<vmem>>, %arg5: memref<256x128xf32, #tpu.memory_space<vmem>>, %arg6: memref<256x128xf32, #tpu.memory_space<vmem>>) attributes {dimension_semantics = [#tpu.dimension_semantics<parallel>, #tpu.dimension_semantics<arbitrary>], iteration_bounds = array<i64: 1, 1>, scalar_prefetch = 0 : i64, scratch_operands = 1 : i64, tpu.core_type = #tpu.core_type<tc>, window_params = [{transform_indices = @transform_0, window_bounds = array<i64: 256, 128>}, {pipeline_mode = #tpu.pipeline_mode<synchronous>, transform_indices = @transform_1, window_bounds = array<i64: 128, 128>}, {pipeline_mode = #tpu.pipeline_mode<synchronous>, transform_indices = @transform_2, window_bounds = array<i64: 1, 128>}, {transform_indices = @transform_3, window_bounds = array<i64: 256, 128>}]} {
    %c0_i32 = arith.constant 0 : i32
    %0 = arith.cmpi eq, %arg1, %c0_i32 : i32
    %1 = arith.extui %0 : i1 to i32
    %c0_i32_0 = arith.constant 0 : i32
    %2 = arith.cmpi ne, %1, %c0_i32_0 : i32
    scf.if %2 {
      %cst_9 = arith.constant 0.000000e+00 : f32
      %15 = vector.broadcast %cst_9 : f32 to vector<256x128xf32>
      %c0_10 = arith.constant 0 : index
      %c0_11 = arith.constant 0 : index
      %16 = vector.load %arg6[%c0_10, %c0_11] : memref<256x128xf32, #tpu.memory_space<vmem>>, vector<256x128xf32>
      tpu.vector_store %arg6[%c0_10, %c0_11], %15 {strides = array<i32>} : memref<256x128xf32, #tpu.memory_space<vmem>>, vector<256x128xf32>,
    } else {
    }
    %c128_i32 = arith.constant 128 : i32
    %3 = arith.muli %arg1, %c128_i32 : i32
    %4 = tpu.assume_multiple %3, 128 : i32
    %5 = arith.index_cast %4 : i32 to index
    %c0 = arith.constant 0 : index
    %6 = vector.load %arg3[%5, %c0] : memref<128x128xf32, #tpu.memory_space<vmem>>, vector<128x128xf32>
    %c0_1 = arith.constant 0 : index
    %c0_2 = arith.constant 0 : index
    %7 = vector.load %arg6[%c0_1, %c0_2] : memref<256x128xf32, #tpu.memory_space<vmem>>, vector<256x128xf32>
    %c0_3 = arith.constant 0 : index
    %c0_4 = arith.constant 0 : index
    %8 = vector.load %arg2[%c0_3, %c0_4] : memref<256x128xf32, #tpu.memory_space<vmem>>, vector<256x128xf32>
    %cst = arith.constant dense<0.000000e+00> : vector<256x128xf32>
    %9 = tpu.matmul %8, %6, %cst {dimension_numbers = #tpu.dot_dimension_numbers<[1], [0], [0], [1], [0, 0, 1, 1], [], []>} : vector<256x128xf32>, vector<128x128xf32>, vector<256x128xf32> -> vector<256x128xf32>
    %10 = arith.addf %7, %9 : vector<256x128xf32>
    %c0_5 = arith.constant 0 : index
    %c0_6 = arith.constant 0 : index
    %11 = vector.load %arg6[%c0_5, %c0_6] : memref<256x128xf32, #tpu.memory_space<vmem>>, vector<256x128xf32>
    tpu.vector_store %arg6[%c0_5, %c0_6], %10 {strides = array<i32>} : memref<256x128xf32, #tpu.memory_space<vmem>>, vector<256x128xf32>,
    %c0_i32_7 = arith.constant 0 : i32
    %12 = arith.cmpi eq, %arg1, %c0_i32_7 : i32
    %13 = arith.extui %12 : i1 to i32
    %c0_i32_8 = arith.constant 0 : i32
    %14 = arith.cmpi ne, %13, %c0_i32_8 : i32
    scf.if %14 {
      %c0_9 = arith.constant 0 : index
      %c0_10 = arith.constant 0 : index
      %15 = vector.load %arg6[%c0_9, %c0_10] : memref<256x128xf32, #tpu.memory_space<vmem>>, vector<256x128xf32>
      %c0_11 = arith.constant 0 : index
      %c0_12 = arith.constant 0 : index
      %16 = vector.load %arg4[%c0_11, %c0_12] : memref<1x128xf32, #tpu.memory_space<vmem>>, vector<1x128xf32>
      %17 = vector.broadcast %16 : vector<1x128xf32> to vector<256x128xf32>
      %18 = arith.addf %15, %17 : vector<256x128xf32>
      %c0_13 = arith.constant 0 : index
      %c0_14 = arith.constant 0 : index
      %19 = vector.load %arg5[%c0_13, %c0_14] : memref<256x128xf32, #tpu.memory_space<vmem>>, vector<256x128xf32>
      tpu.vector_store %arg5[%c0_13, %c0_14], %18 {strides = array<i32>} : memref<256x128xf32, #tpu.memory_space<vmem>>, vector<256x128xf32>,
    } else {
    }
    return
  }
  func.func @transform_0(%arg0: i32, %arg1: i32) -> (i32, i32) {
    %c0_i32 = arith.constant 0 : i32
    return %arg0, %arg1 : i32, i32
  }
  func.func @transform_1(%arg0: i32, %arg1: i32) -> (i32, i32) {
    %c0_i32 = arith.constant 0 : i32
    %c0_i32_0 = arith.constant 0 : i32
    %c0_i32_1 = arith.constant 0 : i32
    return %c0_i32, %c0_i32_0 : i32, i32
  }
  func.func @transform_2(%arg0: i32, %arg1: i32) -> (i32, i32) {
    %c0_i32 = arith.constant 0 : i32
    %c0_i32_0 = arith.constant 0 : i32
    %c0_i32_1 = arith.constant 0 : i32
    return %c0_i32, %c0_i32_0 : i32, i32
  }
  func.func @transform_3(%arg0: i32, %arg1: i32) -> (i32, i32) {
    %c0_i32 = arith.constant 0 : i32
    %c0_i32_0 = arith.constant 0 : i32
    return %arg0, %c0_i32 : i32, i32
  }
}

</mosaic_0001>

<llo_original>
// kernel: tpu_custom_call.1
$region0: #{tpu_custom_call.1}
  #allocation0 [shape = 'u32[]', space=smem, size = 0x4, offset = 0x4, fixed_abs, tag = 'smem constant byte address 0x4 - core index']
  #allocation1 [shape = 'u32[72,128]{1,0:T(1,128)}', space=vmem, size = 0x9000, scoped, tag = 'internal scratch']
  #allocation2 [shape = 'f32[256,128]{1,0:T(8,128)}', space=vmem, size = 0x20000, scoped, tag = 'scratch operand']
  %s0 = inlined_call_operand.hbm [shape: f32[256,128], index: 0, kind: input, shape index: {}]
  %s1 = inlined_call_operand.hbm [shape: f32[128,128], index: 1, kind: input, shape index: {}]
  %s2 = inlined_call_operand.vmem [shape: f32[1,128], index: 2, kind: input, shape index: {}]
  %s3 = inlined_call_operand.hbm [shape: f32[256,128], index: 3, kind: output, shape index: {}]
  %s4 = sld [smem:[#allocation0]]
  $region38: #{tpu_custom_call.1} parent=0
    _
  %s6 = ssub.s32 1, %s4
  %s7 = scalar_select 0, %s6, %s4
  $region1: #{tpu_custom_call.1} parent=0
    #allocation3 [shape = 'u8[131072]{0}', space=vmem, size = 0x20000, scoped, tag = 'input window, operand 0, single buffered']
    #allocation4 [shape = 's32[1]{0}', space=sflag, size = 0x4, scoped, tag = 'scoped memory for tpu_custom_call.1']
    #allocation5 [shape = 's32[1]{0}', space=sflag, size = 0x4, scoped, tag = 'scoped memory for tpu_custom_call.1']
    #allocation6 [shape = 'u8[65536]{0}', space=vmem, size = 0x10000, scoped, tag = 'input window, operand 1, single buffered']
    #allocation7 [shape = 's32[1]{0}', space=sflag, size = 0x4, scoped, tag = 'scoped memory for tpu_custom_call.1']
    #allocation8 [shape = 'u8[131072]{0}', space=vmem, size = 0x20000, scoped, tag = 'output window, operand 0, single buffered']
    %8 = vsyncpa [#allocation4], 0
    %9 = vsyncpa [#allocation7], 0
    %10 = vsyncpa [#allocation5], 0
    // Predicated region
    $region2: #{tpu_custom_call.1} parent=1 // pred_check
      _
    $region3: #{tpu_custom_call.1} parent=1 // pred_check_branch
      %12 = sbr.rel (0) target = $region5
    $region4: #{tpu_custom_call.1} parent=1 // pred_region
      %14 = vsyncadd [#allocation4], 0
      %s15 = sshll.u32 %s0, 4
      %s16 = int_to_ptr.hbm [resolvable:$true] %s15
      %s17 = sshll.u32 [#allocation3], 4
      %s18 = int_to_ptr.vmem [resolvable:$true] %s17
      %23 = dma.hbm_to_vmem [thread:$0]  %s16, 4096, %s18, [#allocation4], 128, 128, 8
    $region5: #{tpu_custom_call.1} parent=1 // pred_fallthru
      _
    // Predicated region
    $region6: #{tpu_custom_call.1} parent=1 // pred_check
      _
    $region7: #{tpu_custom_call.1} parent=1 // pred_check_branch
      %25 = sbr.rel (0) target = $region9
    $region8: #{tpu_custom_call.1} parent=1 // pred_region
      %27 = vsyncadd [#allocation7], 0
      %s28 = sshll.u32 %s1, 4
      %s29 = int_to_ptr.hbm [resolvable:$true] %s28
      %s30 = sshll.u32 [#allocation6], 4
      %s31 = int_to_ptr.vmem [resolvable:$true] %s30
      %36 = dma.hbm_to_vmem [thread:$0]  %s29, 2048, %s31, [#allocation7], 128, 128, 8
    $region9: #{tpu_custom_call.1} parent=1 // pred_fallthru
      _
    // Predicated region
    $region10: #{tpu_custom_call.1} parent=1 // pred_check
      _
    $region11: #{tpu_custom_call.1} parent=1 // pred_check_branch
      %38 = sbr.rel (0) target = $region13
    $region12: #{tpu_custom_call.1} parent=1 // pred_region
      _
    $region13: #{tpu_custom_call.1} parent=1 // pred_fallthru
      _
    // Predicated region
    $region14: #{tpu_custom_call.1} parent=1 // pred_check
      _
    $region15: #{tpu_custom_call.1} parent=1 // pred_check_branch
      %40 = sbr.rel (0) target = $region17
    $region16: #{tpu_custom_call.1} parent=1 // pred_region
      %42 = dma.done [#allocation4], 4096
    $region17: #{tpu_custom_call.1} parent=1 // pred_fallthru
      _
    // Predicated region
    $region18: #{tpu_custom_call.1} parent=1 // pred_check
      _
    $region19: #{tpu_custom_call.1} parent=1 // pred_check_branch
      %44 = sbr.rel (0) target = $region21
    $region20: #{tpu_custom_call.1} parent=1 // pred_region
      %46 = dma.done [#allocation7], 2048
    $region21: #{tpu_custom_call.1} parent=1 // pred_fallthru
      _
    %p47 = scmp.eq.s32.totalorder 0, 0
    // Predicated region
    $region22: #{tpu_custom_call.1} parent=1 // pred_check
      %p48 = pneg %p47
    $region23: #{tpu_custom_call.1} parent=1 // pred_check_branch
      %50 = sbr.rel (%p48) target = $region25
    $region24: #{tpu_custom_call.1} parent=1 // pred_region
      %51 = vst [vmem:[#allocation2] sm:$0xff] 0.0
      %52 = vst [vmem:[#allocation2 + $0x8] sm:$0xff] 0.0
      %53 = vst [vmem:[#allocation2 + $0x10] sm:$0xff] 0.0
      %54 = vst [vmem:[#allocation2 + $0x18] sm:$0xff] 0.0
      %55 = vst [vmem:[#allocation2 + $0x20] sm:$0xff] 0.0
      %56 = vst [vmem:[#allocation2 + $0x28] sm:$0xff] 0.0
      %57 = vst [vmem:[#allocation2 + $0x30] sm:$0xff] 0.0
      %58 = vst [vmem:[#allocation2 + $0x38] sm:$0xff] 0.0
      %59 = vst [vmem:[#allocation2 + $0x40] sm:$0xff] 0.0
      %60 = vst [vmem:[#allocation2 + $0x48] sm:$0xff] 0.0
      %61 = vst [vmem:[#allocation2 + $0x50] sm:$0xff] 0.0
      %62 = vst [vmem:[#allocation2 + $0x58] sm:$0xff] 0.0
      %63 = vst [vmem:[#allocation2 + $0x60] sm:$0xff] 0.0
      %64 = vst [vmem:[#allocation2 + $0x68] sm:$0xff] 0.0
      %65 = vst [vmem:[#allocation2 + $0x70] sm:$0xff] 0.0
      %66 = vst [vmem:[#allocation2 + $0x78] sm:$0xff] 0.0
      %67 = vst [vmem:[#allocation2 + $0x80] sm:$0xff] 0.0
      %68 = vst [vmem:[#allocation2 + $0x88] sm:$0xff] 0.0
      %69 = vst [vmem:[#allocation2 + $0x90] sm:$0xff] 0.0
      %70 = vst [vmem:[#allocation2 + $0x98] sm:$0xff] 0.0
      %71 = vst [vmem:[#allocation2 + $0xa0] sm:$0xff] 0.0
      %72 = vst [vmem:[#allocation2 + $0xa8] sm:$0xff] 0.0
      %73 = vst [vmem:[#allocation2 + $0xb0] sm:$0xff] 0.0
      %74 = vst [vmem:[#allocation2 + $0xb8] sm:$0xff] 0.0
      %75 = vst [vmem:[#allocation2 + $0xc0] sm:$0xff] 0.0
      %76 = vst [vmem:[#allocation2 + $0xc8] sm:$0xff] 0.0
      %77 = vst [vmem:[#allocation2 + $0xd0] sm:$0xff] 0.0
      %78 = vst [vmem:[#allocation2 + $0xd8] sm:$0xff] 0.0
      %79 = vst [vmem:[#allocation2 + $0xe0] sm:$0xff] 0.0
      %80 = vst [vmem:[#allocation2 + $0xe8] sm:$0xff] 0.0
      %81 = vst [vmem:[#allocation2 + $0xf0] sm:$0xff] 0.0
      %82 = vst [vmem:[#allocation2 + $0xf8] sm:$0xff] 0.0
    $region25: #{tpu_custom_call.1} parent=1 // pred_fallthru
      _
    %s83 = smul.u32 0, 128
    %s84 = scalar_lea.vmem [#allocation6], %s83
    %v85 = vld [vmem:[%s84] sm:$0xff]
    %v86 = vld [vmem:[%s84 + $0x8] sm:$0xff]
    %v87 = vld [vmem:[%s84 + $0x10] sm:$0xff]
    %v88 = vld [vmem:[%s84 + $0x18] sm:$0xff]
    %v89 = vld [vmem:[%s84 + $0x20] sm:$0xff]
    %v90 = vld [vmem:[%s84 + $0x28] sm:$0xff]
    %v91 = vld [vmem:[%s84 + $0x30] sm:$0xff]
    %v92 = vld [vmem:[%s84 + $0x38] sm:$0xff]
    %v93 = vld [vmem:[%s84 + $0x40] sm:$0xff]
    %v94 = vld [vmem:[%s84 + $0x48] sm:$0xff]
    %v95 = vld [vmem:[%s84 + $0x50] sm:$0xff]
    %v96 = vld [vmem:[%s84 + $0x58] sm:$0xff]
    %v97 = vld [vmem:[%s84 + $0x60] sm:$0xff]
    %v98 = vld [vmem:[%s84 + $0x68] sm:$0xff]
    %v99 = vld [vmem:[%s84 + $0x70] sm:$0xff]
    %v100 = vld [vmem:[%s84 + $0x78] sm:$0xff]
    %v101 = vld [vmem:[#allocation2] sm:$0xff]
    %v102 = vld [vmem:[#allocation2 + $0x8] sm:$0xff]
    %v103 = vld [vmem:[#allocation2 + $0x10] sm:$0xff]
    %v104 = vld [vmem:[#allocation2 + $0x18] sm:$0xff]
    %v105 = vld [vmem:[#allocation2 + $0x20] sm:$0xff]
    %v106 = vld [vmem:[#allocation2 + $0x28] sm:$0xff]
    %v107 = vld [vmem:[#allocation2 + $0x30] sm:$0xff]
    %v108 = vld [vmem:[#allocation2 + $0x38] sm:$0xff]
    %v109 = vld [vmem:[#allocation2 + $0x40] sm:$0xff]
    %v110 = vld [vmem:[#allocation2 + $0x48] sm:$0xff]
    %v111 = vld [vmem:[#allocation2 + $0x50] sm:$0xff]
    %v112 = vld [vmem:[#allocation2 + $0x58] sm:$0xff]
    %v113 = vld [vmem:[#allocation2 + $0x60] sm:$0xff]
    %v114 = vld [vmem:[#allocation2 + $0x68] sm:$0xff]
    %v115 = vld [vmem:[#allocation2 + $0x70] sm:$0xff]
    %v116 = vld [vmem:[#allocation2 + $0x78] sm:$0xff]
    %v117 = vld [vmem:[#allocation2 + $0x80] sm:$0xff]
    %v118 = vld [vmem:[#allocation2 + $0x88] sm:$0xff]
    %v119 = vld [vmem:[#allocation2 + $0x90] sm:$0xff]
    %v120 = vld [vmem:[#allocation2 + $0x98] sm:$0xff]
    %v121 = vld [vmem:[#allocation2 + $0xa0] sm:$0xff]
    %v122 = vld [vmem:[#allocation2 + $0xa8] sm:$0xff]
    %v123 = vld [vmem:[#allocation2 + $0xb0] sm:$0xff]
    %v124 = vld [vmem:[#allocation2 + $0xb8] sm:$0xff]
    %v125 = vld [vmem:[#allocation2 + $0xc0] sm:$0xff]
    %v126 = vld [vmem:[#allocation2 + $0xc8] sm:$0xff]
    %v127 = vld [vmem:[#allocation2 + $0xd0] sm:$0xff]
    %v128 = vld [vmem:[#allocation2 + $0xd8] sm:$0xff]
    %v129 = vld [vmem:[#allocation2 + $0xe0] sm:$0xff]
    %v130 = vld [vmem:[#allocation2 + $0xe8] sm:$0xff]
    %v131 = vld [vmem:[#allocation2 + $0xf0] sm:$0xff]
    %v132 = vld [vmem:[#allocation2 + $0xf8] sm:$0xff]
    %v133 = vld [vmem:[#allocation3] sm:$0xff]
    %v134 = vld [vmem:[#allocation3 + $0x8] sm:$0xff]
    %v135 = vld [vmem:[#allocation3 + $0x10] sm:$0xff]
    %v136 = vld [vmem:[#allocation3 + $0x18] sm:$0xff]
    %v137 = vld [vmem:[#allocation3 + $0x20] sm:$0xff]
    %v138 = vld [vmem:[#allocation3 + $0x28] sm:$0xff]
    %v139 = vld [vmem:[#allocation3 + $0x30] sm:$0xff]
    %v140 = vld [vmem:[#allocation3 + $0x38] sm:$0xff]
    %v141 = vld [vmem:[#allocation3 + $0x40] sm:$0xff]
    %v142 = vld [vmem:[#allocation3 + $0x48] sm:$0xff]
    %v143 = vld [vmem:[#allocation3 + $0x50] sm:$0xff]
    %v144 = vld [vmem:[#allocation3 + $0x58] sm:$0xff]
    %v145 = vld [vmem:[#allocation3 + $0x60] sm:$0xff]
    %v146 = vld [vmem:[#allocation3 + $0x68] sm:$0xff]
    %v147 = vld [vmem:[#allocation3 + $0x70] sm:$0xff]
    %v148 = vld [vmem:[#allocation3 + $0x78] sm:$0xff]
    %v149 = vld [vmem:[#allocation3 + $0x80] sm:$0xff]
    %v150 = vld [vmem:[#allocation3 + $0x88] sm:$0xff]
    %v151 = vld [vmem:[#allocation3 + $0x90] sm:$0xff]
    %v152 = vld [vmem:[#allocation3 + $0x98] sm:$0xff]
    %v153 = vld [vmem:[#allocation3 + $0xa0] sm:$0xff]
    %v154 = vld [vmem:[#allocation3 + $0xa8] sm:$0xff]
    %v155 = vld [vmem:[#allocation3 + $0xb0] sm:$0xff]
    %v156 = vld [vmem:[#allocation3 + $0xb8] sm:$0xff]
    %v157 = vld [vmem:[#allocation3 + $0xc0] sm:$0xff]
    %v158 = vld [vmem:[#allocation3 + $0xc8] sm:$0xff]
    %v159 = vld [vmem:[#allocation3 + $0xd0] sm:$0xff]
    %v160 = vld [vmem:[#allocation3 + $0xd8] sm:$0xff]
    %v161 = vld [vmem:[#allocation3 + $0xe0] sm:$0xff]
    %v162 = vld [vmem:[#allocation3 + $0xe8] sm:$0xff]
    %v163 = vld [vmem:[#allocation3 + $0xf0] sm:$0xff]
    %v164 = vld [vmem:[#allocation3 + $0xf8] sm:$0xff]
    %165 = vmatpush.msra.mxu0 %v100
    %166 = vmatpush.msra.mxu0 %v99
    %167 = vmatpush.msra.mxu0 %v98
    %168 = vmatpush.msra.mxu0 %v97
    %169 = vmatpush.msra.mxu0 %v96
    %170 = vmatpush.msra.mxu0 %v95
    %171 = vmatpush.msra.mxu0 %v94
    %172 = vmatpush.msra.mxu0 %v93
    %173 = vmatpush.msra.mxu0 %v92
    %174 = vmatpush.msra.mxu0 %v91
    %175 = vmatpush.msra.mxu0 %v90
    %176 = vmatpush.msra.mxu0 %v89
    %177 = vmatpush.msra.mxu0 %v88
    %178 = vmatpush.msra.mxu0 %v87
    %179 = vmatpush.msra.mxu0 %v86
    %180 = vmatpush.msra.mxu0 %v85
    %181 = vmatmul.f32.gmra.mxu0 %v133
    %v182 = vpop.f32.mrf.mxu0
    %v183 = vadd.f32 0.0, %v182
    %184 = vmatmul.f32.gmra.mxu0 %v134
    %v185 = vpop.f32.mrf.mxu0
    %v186 = vadd.f32 0.0, %v185
    %187 = vmatmul.f32.gmra.mxu0 %v135
    %v188 = vpop.f32.mrf.mxu0
    %v189 = vadd.f32 0.0, %v188
    %190 = vmatmul.f32.gmra.mxu0 %v136
    %v191 = vpop.f32.mrf.mxu0
    %v192 = vadd.f32 0.0, %v191
    %193 = vmatmul.f32.gmra.mxu0 %v137
    %v194 = vpop.f32.mrf.mxu0
    %v195 = vadd.f32 0.0, %v194
    %196 = vmatmul.f32.gmra.mxu0 %v138
    %v197 = vpop.f32.mrf.mxu0
    %v198 = vadd.f32 0.0, %v197
    %199 = vmatmul.f32.gmra.mxu0 %v139
    %v200 = vpop.f32.mrf.mxu0
    %v201 = vadd.f32 0.0, %v200
    %202 = vmatmul.f32.gmra.mxu0 %v140
    %v203 = vpop.f32.mrf.mxu0
    %v204 = vadd.f32 0.0, %v203
    %205 = vmatmul.f32.gmra.mxu0 %v141
    %v206 = vpop.f32.mrf.mxu0
    %v207 = vadd.f32 0.0, %v206
    %208 = vmatmul.f32.gmra.mxu0 %v142
    %v209 = vpop.f32.mrf.mxu0
    %v210 = vadd.f32 0.0, %v209
    %211 = vmatmul.f32.gmra.mxu0 %v143
    %v212 = vpop.f32.mrf.mxu0
    %v213 = vadd.f32 0.0, %v212
    %214 = vmatmul.f32.gmra.mxu0 %v144
    %v215 = vpop.f32.mrf.mxu0
    %v216 = vadd.f32 0.0, %v215
    %217 = vmatmul.f32.gmra.mxu0 %v145
    %v218 = vpop.f32.mrf.mxu0
    %v219 = vadd.f32 0.0, %v218
    %220 = vmatmul.f32.gmra.mxu0 %v146
    %v221 = vpop.f32.mrf.mxu0
    %v222 = vadd.f32 0.0, %v221
    %223 = vmatmul.f32.gmra.mxu0 %v147
    %v224 = vpop.f32.mrf.mxu0
    %v225 = vadd.f32 0.0, %v224
    %226 = vmatmul.f32.gmra.mxu0 %v148
    %v227 = vpop.f32.mrf.mxu0
    %v228 = vadd.f32 0.0, %v227
    %229 = vmatmul.f32.gmra.mxu0 %v149
    %v230 = vpop.f32.mrf.mxu0
    %v231 = vadd.f32 0.0, %v230
    %232 = vmatmul.f32.gmra.mxu0 %v150
    %v233 = vpop.f32.mrf.mxu0
    %v234 = vadd.f32 0.0, %v233
    %235 = vmatmul.f32.gmra.mxu0 %v151
    %v236 = vpop.f32.mrf.mxu0
    %v237 = vadd.f32 0.0, %v236
    %238 = vmatmul.f32.gmra.mxu0 %v152
    %v239 = vpop.f32.mrf.mxu0
    %v240 = vadd.f32 0.0, %v239
    %241 = vmatmul.f32.gmra.mxu0 %v153
    %v242 = vpop.f32.mrf.mxu0
    %v243 = vadd.f32 0.0, %v242
    %244 = vmatmul.f32.gmra.mxu0 %v154
    %v245 = vpop.f32.mrf.mxu0
    %v246 = vadd.f32 0.0, %v245
    %247 = vmatmul.f32.gmra.mxu0 %v155
    %v248 = vpop.f32.mrf.mxu0
    %v249 = vadd.f32 0.0, %v248
    %250 = vmatmul.f32.gmra.mxu0 %v156
    %v251 = vpop.f32.mrf.mxu0
    %v252 = vadd.f32 0.0, %v251
    %253 = vmatmul.f32.gmra.mxu0 %v157
    %v254 = vpop.f32.mrf.mxu0
    %v255 = vadd.f32 0.0, %v254
    %256 = vmatmul.f32.gmra.mxu0 %v158
    %v257 = vpop.f32.mrf.mxu0
    %v258 = vadd.f32 0.0, %v257
    %259 = vmatmul.f32.gmra.mxu0 %v159
    %v260 = vpop.f32.mrf.mxu0
    %v261 = vadd.f32 0.0, %v260
    %262 = vmatmul.f32.gmra.mxu0 %v160
    %v263 = vpop.f32.mrf.mxu0
    %v264 = vadd.f32 0.0, %v263
    %265 = vmatmul.f32.gmra.mxu0 %v161
    %v266 = vpop.f32.mrf.mxu0
    %v267 = vadd.f32 0.0, %v266
    %268 = vmatmul.f32.gmra.mxu0 %v162
    %v269 = vpop.f32.mrf.mxu0
    %v270 = vadd.f32 0.0, %v269
    %271 = vmatmul.f32.gmra.mxu0 %v163
    %v272 = vpop.f32.mrf.mxu0
    %v273 = vadd.f32 0.0, %v272
    %274 = vmatmul.f32.gmra.mxu0 %v164
    %v275 = vpop.f32.mrf.mxu0
    %v276 = vadd.f32 0.0, %v275
    %277 = vdwg.mxu0
    %v278 = vadd.f32 %v101, %v183
    %v279 = vadd.f32 %v102, %v186
    %v280 = vadd.f32 %v103, %v189
    %v281 = vadd.f32 %v104, %v192
    %v282 = vadd.f32 %v105, %v195
    %v283 = vadd.f32 %v106, %v198
    %v284 = vadd.f32 %v107, %v201
    %v285 = vadd.f32 %v108, %v204
    %v286 = vadd.f32 %v109, %v207
    %v287 = vadd.f32 %v110, %v210
    %v288 = vadd.f32 %v111, %v213
    %v289 = vadd.f32 %v112, %v216
    %v290 = vadd.f32 %v113, %v219
    %v291 = vadd.f32 %v114, %v222
    %v292 = vadd.f32 %v115, %v225
    %v293 = vadd.f32 %v116, %v228
    %v294 = vadd.f32 %v117, %v231
    %v295 = vadd.f32 %v118, %v234
    %v296 = vadd.f32 %v119, %v237
    %v297 = vadd.f32 %v120, %v240
    %v298 = vadd.f32 %v121, %v243
    %v299 = vadd.f32 %v122, %v246
    %v300 = vadd.f32 %v123, %v249
    %v301 = vadd.f32 %v124, %v252
    %v302 = vadd.f32 %v125, %v255
    %v303 = vadd.f32 %v126, %v258
    %v304 = vadd.f32 %v127, %v261
    %v305 = vadd.f32 %v128, %v264
    %v306 = vadd.f32 %v129, %v267
    %v307 = vadd.f32 %v130, %v270
    %v308 = vadd.f32 %v131, %v273
    %v309 = vadd.f32 %v132, %v276
    %310 = vst [vmem:[#allocation2] sm:$0xff] %v278
    %311 = vst [vmem:[#allocation2 + $0x8] sm:$0xff] %v279
    %312 = vst [vmem:[#allocation2 + $0x10] sm:$0xff] %v280
    %313 = vst [vmem:[#allocation2 + $0x18] sm:$0xff] %v281
    %314 = vst [vmem:[#allocation2 + $0x20] sm:$0xff] %v282
    %315 = vst [vmem:[#allocation2 + $0x28] sm:$0xff] %v283
    %316 = vst [vmem:[#allocation2 + $0x30] sm:$0xff] %v284
    %317 = vst [vmem:[#allocation2 + $0x38] sm:$0xff] %v285
    %318 = vst [vmem:[#allocation2 + $0x40] sm:$0xff] %v286
    %319 = vst [vmem:[#allocation2 + $0x48] sm:$0xff] %v287
    %320 = vst [vmem:[#allocation2 + $0x50] sm:$0xff] %v288
    %321 = vst [vmem:[#allocation2 + $0x58] sm:$0xff] %v289
    %322 = vst [vmem:[#allocation2 + $0x60] sm:$0xff] %v290
    %323 = vst [vmem:[#allocation2 + $0x68] sm:$0xff] %v291
    %324 = vst [vmem:[#allocation2 + $0x70] sm:$0xff] %v292
    %325 = vst [vmem:[#allocation2 + $0x78] sm:$0xff] %v293
    %326 = vst [vmem:[#allocation2 + $0x80] sm:$0xff] %v294
    %327 = vst [vmem:[#allocation2 + $0x88] sm:$0xff] %v295
    %328 = vst [vmem:[#allocation2 + $0x90] sm:$0xff] %v296
    %329 = vst [vmem:[#allocation2 + $0x98] sm:$0xff] %v297
    %330 = vst [vmem:[#allocation2 + $0xa0] sm:$0xff] %v298
    %331 = vst [vmem:[#allocation2 + $0xa8] sm:$0xff] %v299
    %332 = vst [vmem:[#allocation2 + $0xb0] sm:$0xff] %v300
    %333 = vst [vmem:[#allocation2 + $0xb8] sm:$0xff] %v301
    %334 = vst [vmem:[#allocation2 + $0xc0] sm:$0xff] %v302
    %335 = vst [vmem:[#allocation2 + $0xc8] sm:$0xff] %v303
    %336 = vst [vmem:[#allocation2 + $0xd0] sm:$0xff] %v304
    %337 = vst [vmem:[#allocation2 + $0xd8] sm:$0xff] %v305
    %338 = vst [vmem:[#allocation2 + $0xe0] sm:$0xff] %v306
    %339 = vst [vmem:[#allocation2 + $0xe8] sm:$0xff] %v307
    %340 = vst [vmem:[#allocation2 + $0xf0] sm:$0xff] %v308
    %341 = vst [vmem:[#allocation2 + $0xf8] sm:$0xff] %v309
    // Predicated region
    $region26: #{tpu_custom_call.1} parent=1 // pred_check
      %p342 = pneg %p47
    $region27: #{tpu_custom_call.1} parent=1 // pred_check_branch
      %344 = sbr.rel (%p342) target = $region29
    $region28: #{tpu_custom_call.1} parent=1 // pred_region
      %v345 = vld [vmem:[#allocation2] sm:$0xff]
      %v346 = vld [vmem:[#allocation2 + $0x8] sm:$0xff]
      %v347 = vld [vmem:[#allocation2 + $0x10] sm:$0xff]
      %v348 = vld [vmem:[#allocation2 + $0x18] sm:$0xff]
      %v349 = vld [vmem:[#allocation2 + $0x20] sm:$0xff]
      %v350 = vld [vmem:[#allocation2 + $0x28] sm:$0xff]
      %v351 = vld [vmem:[#allocation2 + $0x30] sm:$0xff]
      %v352 = vld [vmem:[#allocation2 + $0x38] sm:$0xff]
      %v353 = vld [vmem:[#allocation2 + $0x40] sm:$0xff]
      %v354 = vld [vmem:[#allocation2 + $0x48] sm:$0xff]
      %v355 = vld [vmem:[#allocation2 + $0x50] sm:$0xff]
      %v356 = vld [vmem:[#allocation2 + $0x58] sm:$0xff]
      %v357 = vld [vmem:[#allocation2 + $0x60] sm:$0xff]
      %v358 = vld [vmem:[#allocation2 + $0x68] sm:$0xff]
      %v359 = vld [vmem:[#allocation2 + $0x70] sm:$0xff]
      %v360 = vld [vmem:[#allocation2 + $0x78] sm:$0xff]
      %v361 = vld [vmem:[#allocation2 + $0x80] sm:$0xff]
      %v362 = vld [vmem:[#allocation2 + $0x88] sm:$0xff]
      %v363 = vld [vmem:[#allocation2 + $0x90] sm:$0xff]
      %v364 = vld [vmem:[#allocation2 + $0x98] sm:$0xff]
      %v365 = vld [vmem:[#allocation2 + $0xa0] sm:$0xff]
      %v366 = vld [vmem:[#allocation2 + $0xa8] sm:$0xff]
      %v367 = vld [vmem:[#allocation2 + $0xb0] sm:$0xff]
      %v368 = vld [vmem:[#allocation2 + $0xb8] sm:$0xff]
      %v369 = vld [vmem:[#allocation2 + $0xc0] sm:$0xff]
      %v370 = vld [vmem:[#allocation2 + $0xc8] sm:$0xff]
      %v371 = vld [vmem:[#allocation2 + $0xd0] sm:$0xff]
      %v372 = vld [vmem:[#allocation2 + $0xd8] sm:$0xff]
      %v373 = vld [vmem:[#allocation2 + $0xe0] sm:$0xff]
      %v374 = vld [vmem:[#allocation2 + $0xe8] sm:$0xff]
      %v375 = vld [vmem:[#allocation2 + $0xf0] sm:$0xff]
      %v376 = vld [vmem:[#allocation2 + $0xf8] sm:$0xff]
      %v377 = vld [vmem:[%s2] sm:$0x1]
      %v379 = vperm.slane %v377, 0
      %v381 = vadd.f32 %v345, %v379
      %v382 = vadd.f32 %v346, %v379
      %v383 = vadd.f32 %v347, %v379
      %v384 = vadd.f32 %v348, %v379
      %v385 = vadd.f32 %v349, %v379
      %v386 = vadd.f32 %v350, %v379
      %v387 = vadd.f32 %v351, %v379
      %v388 = vadd.f32 %v352, %v379
      %v389 = vadd.f32 %v353, %v379
      %v390 = vadd.f32 %v354, %v379
      %v391 = vadd.f32 %v355, %v379
      %v392 = vadd.f32 %v356, %v379
      %v393 = vadd.f32 %v357, %v379
      %v394 = vadd.f32 %v358, %v379
      %v395 = vadd.f32 %v359, %v379
      %v396 = vadd.f32 %v360, %v379
      %v397 = vadd.f32 %v361, %v379
      %v398 = vadd.f32 %v362, %v379
      %v399 = vadd.f32 %v363, %v379
      %v400 = vadd.f32 %v364, %v379
      %v401 = vadd.f32 %v365, %v379
      %v402 = vadd.f32 %v366, %v379
      %v403 = vadd.f32 %v367, %v379
      %v404 = vadd.f32 %v368, %v379
      %v405 = vadd.f32 %v369, %v379
      %v406 = vadd.f32 %v370, %v379
      %v407 = vadd.f32 %v371, %v379
      %v408 = vadd.f32 %v372, %v379
      %v409 = vadd.f32 %v373, %v379
      %v410 = vadd.f32 %v374, %v379
      %v411 = vadd.f32 %v375, %v379
      %v412 = vadd.f32 %v376, %v379
      %413 = vst [vmem:[#allocation8] sm:$0xff] %v381
      %414 = vst [vmem:[#allocation8 + $0x8] sm:$0xff] %v382
      %415 = vst [vmem:[#allocation8 + $0x10] sm:$0xff] %v383
      %416 = vst [vmem:[#allocation8 + $0x18] sm:$0xff] %v384
      %417 = vst [vmem:[#allocation8 + $0x20] sm:$0xff] %v385
      %418 = vst [vmem:[#allocation8 + $0x28] sm:$0xff] %v386
      %419 = vst [vmem:[#allocation8 + $0x30] sm:$0xff] %v387
      %420 = vst [vmem:[#allocation8 + $0x38] sm:$0xff] %v388
      %421 = vst [vmem:[#allocation8 + $0x40] sm:$0xff] %v389
      %422 = vst [vmem:[#allocation8 + $0x48] sm:$0xff] %v390
      %423 = vst [vmem:[#allocation8 + $0x50] sm:$0xff] %v391
      %424 = vst [vmem:[#allocation8 + $0x58] sm:$0xff] %v392
      %425 = vst [vmem:[#allocation8 + $0x60] sm:$0xff] %v393
      %426 = vst [vmem:[#allocation8 + $0x68] sm:$0xff] %v394
      %427 = vst [vmem:[#allocation8 + $0x70] sm:$0xff] %v395
      %428 = vst [vmem:[#allocation8 + $0x78] sm:$0xff] %v396
      %429 = vst [vmem:[#allocation8 + $0x80] sm:$0xff] %v397
      %430 = vst [vmem:[#allocation8 + $0x88] sm:$0xff] %v398
      %431 = vst [vmem:[#allocation8 + $0x90] sm:$0xff] %v399
      %432 = vst [vmem:[#allocation8 + $0x98] sm:$0xff] %v400
      %433 = vst [vmem:[#allocation8 + $0xa0] sm:$0xff] %v401
      %434 = vst [vmem:[#allocation8 + $0xa8] sm:$0xff] %v402
      %435 = vst [vmem:[#allocation8 + $0xb0] sm:$0xff] %v403
      %436 = vst [vmem:[#allocation8 + $0xb8] sm:$0xff] %v404
      %437 = vst [vmem:[#allocation8 + $0xc0] sm:$0xff] %v405
      %438 = vst [vmem:[#allocation8 + $0xc8] sm:$0xff] %v406
      %439 = vst [vmem:[#allocation8 + $0xd0] sm:$0xff] %v407
      %440 = vst [vmem:[#allocation8 + $0xd8] sm:$0xff] %v408
      %441 = vst [vmem:[#allocation8 + $0xe0] sm:$0xff] %v409
      %442 = vst [vmem:[#allocation8 + $0xe8] sm:$0xff] %v410
      %443 = vst [vmem:[#allocation8 + $0xf0] sm:$0xff] %v411
      %444 = vst [vmem:[#allocation8 + $0xf8] sm:$0xff] %v412
    $region29: #{tpu_custom_call.1} parent=1 // pred_fallthru
      _
    // Predicated region
    $region30: #{tpu_custom_call.1} parent=1 // pred_check
      _
    $region31: #{tpu_custom_call.1} parent=1 // pred_check_branch
      %446 = sbr.rel (0) target = $region33
    $region32: #{tpu_custom_call.1} parent=1 // pred_region
      %448 = vsyncadd [#allocation5], 0
      %s449 = sshll.u32 [#allocation8], 4
      %s450 = int_to_ptr.vmem [resolvable:$true] %s449
      %s451 = sshll.u32 %s3, 4
      %s452 = int_to_ptr.hbm [resolvable:$true] %s451
      %457 = dma.vmem_to_hbm [thread:$0]  %s450, 4096, %s452, [#allocation5], 128, 128, 8
    $region33: #{tpu_custom_call.1} parent=1 // pred_fallthru
      _
    // Predicated region
    $region34: #{tpu_custom_call.1} parent=1 // pred_check
      _
    $region35: #{tpu_custom_call.1} parent=1 // pred_check_branch
      %459 = sbr.rel (0) target = $region37
    $region36: #{tpu_custom_call.1} parent=1 // pred_region
      %461 = dma.done [#allocation5], 4096
    $region37: #{tpu_custom_call.1} parent=1 // pred_fallthru
      _
    %462 = vsyncpa [#allocation4], 1
    %463 = vsyncpa [#allocation7], 1
    %464 = vsyncpa [#allocation5], 1

</llo_original>
